<compile_context>
chip_gen: v6e
topology: v6e:2x2x1
jax: 0.10.0
libtpu: 0.0.40
codegen_flags: <defaults>
</compile_context>

<pallas_src>
import functools

import jax
import jax.numpy as jnp
from jax.experimental import pallas as pl
from jax.experimental.pallas import tpu as pltpu


_VMEM_IO_BUDGET_BYTES = 12 * 1024 * 1024   # double-buffered in+out blocks
_VMEM_LIMIT_BYTES = 40 * 1024 * 1024       # scoped VMEM limit (ok on v5e/v6e/v7x)


def _random_shift_kernel(shift_ref, x_ref, o_ref, wcol_ref, tpad_ref, *,
                         pad, block_b):
    """Replicate-padded integer pixel shift for a block of samples.

    shift_ref: SMEM int32 (2*n,)     flattened (sx, sy) per sample (prefetched)
    x_ref    : VMEM (block_b, c, h, w)
    o_ref    : VMEM (block_b, c, h, w)
    wcol_ref : VMEM (2*pad+1, w, w)  scratch: column-selection matrices
    tpad_ref : VMEM (c, h+2*pad, w)  scratch: row-replicate-padded staging
    """
    _, c, h, w = x_ref.shape
    dtype = x_ref.dtype
    blk = pl.program_id(0)

    # ---- Build all 2*pad+1 column-selection matrices once per grid step ----
    # wcol[s][k, j] = 1  iff  k == clamp(j + (s - pad), 0, w - 1)
    src = jax.lax.broadcasted_iota(jnp.int32, (w, w), 0)   # source column k
    dst = jax.lax.broadcasted_iota(jnp.int32, (w, w), 1)   # output column j
    for s in range(2 * pad + 1):
        dx = s - pad
        wcol_ref[s] = (src == jnp.clip(dst + dx, 0, w - 1)).astype(dtype)

    # ---- Per-sample shift ---------------------------------------------------
    def body(b, carry):
        smp = blk * block_b + b
        sx = shift_ref[2 * smp + 0]        # column shift index in [0, 2*pad]
        sy = shift_ref[2 * smp + 1]        # row shift index    in [0, 2*pad]

        # Column stage: one MXU matmul across all channels & rows at once.
        xf = x_ref[b].reshape(c * h, w)                         # (c*h, w)
        t = jnp.dot(xf, wcol_ref[sx], preferred_element_type=jnp.float32)
        t = t.astype(dtype).reshape(c, h, w)                    # exact (0/1 weights)

        # Row stage: replicate-pad rows into VMEM scratch, then copy the
        # h-row window at dynamic sublane offset sy (pure data movement).
        tpad_ref[:, pad:pad + h, :] = t
        tpad_ref[:, 0:pad, :] = jnp.broadcast_to(t[:, 0:1, :], (c, pad, w))
        tpad_ref[:, pad + h:2 * pad + h, :] = jnp.broadcast_to(
            t[:, h - 1:h, :], (c, pad, w))
        for ci in range(c):
            o_ref[b, ci] = tpad_ref[ci, pl.ds(sy, h), :]
        return carry

    jax.lax.fori_loop(0, block_b, body, 0)


def _padded_sample_bytes(c, h, w, dtype):
    """VMEM footprint of one (c, h, w) sample including (sublane,128) tiling."""
    itemsize = jnp.dtype(dtype).itemsize
    sublane = max(8, 32 // itemsize)            # 8 f32 / 16 bf16 / 32 int8
    ph = -(-h // sublane) * sublane
    pw = -(-w // 128) * 128
    return c * ph * pw * itemsize


def _pick_block_batch(n, sample_bytes):
    """Samples per grid step.

    Fit double-buffered in+out blocks in the VMEM budget, target >= 8 grid
    steps (as long as blocks stay >= ~1 MiB) so the pipeline can overlap DMA
    with compute, and prefer an even step count for v7x megacore balance.
    """
    max_b = min(n, max(1, _VMEM_IO_BUDGET_BYTES // (4 * sample_bytes)))
    min_useful_b = max(1, (1 << 20) // sample_bytes)
    target_steps = min(8, n)
    allowed = [b for b in range(1, max_b + 1)
               if n % b == 0 and (n // b >= target_steps or b <= min_useful_b)]
    if not allowed:
        allowed = [1]
    even = [b for b in allowed if (n // b) % 2 == 0]
    return (even or allowed)[-1]


@functools.partial(jax.jit, static_argnames=("pad",))
def random_shifts_aug(x, key, *, pad):
    """DrQ-v2 RandomShiftsAug.forward (exact integer-pixel replicate shift)."""
    n, c, h, w = x.shape
    assert h == w
    if pad == 0:
        return x

    # Only the integer shifts matter: the DrQ-v2 grid is an exact pixel
    # translation of the replicate-padded image.
    # TODO(synk): torch.randint's RNG stream cannot be reproduced in JAX; we
    # draw equivalent uniform integer shifts with jax.random instead.
    shift_int = jax.random.randint(key, (n, 2), 0, 2 * pad + 1, dtype=jnp.int32)

    block_b = _pick_block_batch(n, _padded_sample_bytes(c, h, w, x.dtype))
    grid = (n // block_b,)

    kernel = functools.partial(_random_shift_kernel, pad=pad, block_b=block_b)

    flops = 2 * n * c * h * w * w                       # one selection matmul
    bytes_accessed = 2 * n * c * h * w * x.dtype.itemsize + shift_int.size * 4

    return pl.pallas_call(
        kernel,
        out_shape=jax.ShapeDtypeStruct((n, c, h, w), x.dtype),
        grid_spec=pltpu.PrefetchScalarGridSpec(
            num_scalar_prefetch=1,
            grid=grid,
            in_specs=[pl.BlockSpec((block_b, c, h, w), lambda i, s: (i, 0, 0, 0))],
            out_specs=pl.BlockSpec((block_b, c, h, w), lambda i, s: (i, 0, 0, 0)),
            scratch_shapes=[
                pltpu.VMEM((2 * pad + 1, w, w), x.dtype),   # column selectors
                pltpu.VMEM((c, h + 2 * pad, w), x.dtype),   # row-padded staging
            ],
        ),
        compiler_params=pltpu.CompilerParams(
            dimension_semantics=("parallel",),
            vmem_limit_bytes=_VMEM_LIMIT_BYTES,
        ),
        cost_estimate=pl.CostEstimate(
            flops=flops, transcendentals=0, bytes_accessed=bytes_accessed),
    )(shift_int.reshape(-1), x)


def _reference_shift(x, shift_int, pad):
    """Pure-JAX reference: replicate-padded integer shift (== the torch op)."""
    n, c, h, w = x.shape
    dx = shift_int[:, 0] - pad
    dy = shift_int[:, 1] - pad
    rows = jnp.clip(jnp.arange(h)[None, :] + dy[:, None], 0, h - 1)   # (n, h)
    cols = jnp.clip(jnp.arange(w)[None, :] + dx[:, None], 0, w - 1)   # (n, w)
    return x[jnp.arange(n)[:, None, None, None],
             jnp.arange(c)[None, :, None, None],
             rows[:, None, :, None],
             cols[:, None, None, :]]


if __name__ == "__main__":
    pad = 4
    n, c, h, w = 2, 4, 16, 16

    key = jax.random.PRNGKey(0)
    kx, kshift = jax.random.split(key)
    # Integer-valued test image: the augmentation is an exact pixel selection,
    # and small integers are exactly representable in bf16/f32, so the kernel
    # must match the gather reference exactly regardless of the MXU's f32
    # accumulation strategy.  (The kernel itself accepts arbitrary floats.)
    x = jnp.round(jax.random.normal(kx, (n, c, h, w), dtype=jnp.float32) * 8.0)

    out = jax.block_until_ready(random_shifts_aug(x, kshift, pad=pad))

    # Same key / same draw as inside the wrapper -> identical shifts.
    shift_int = jax.random.randint(kshift, (n, 2), 0, 2 * pad + 1, dtype=jnp.int32)
    ref = _reference_shift(x, shift_int, pad)

    assert out.shape == (n, c, h, w)
    assert jnp.allclose(out, ref, atol=1e-6, rtol=0.0), \
        float(jnp.max(jnp.abs(out - ref)))
    print("KERNEL_OK")
</pallas_src>

<mosaic_0001>
module attributes {stable_mosaic.version = 11 : i64} {
  func.func @_random_shift_kernel(%arg0: i32, %arg1: memref<4xi32, #tpu.memory_space<smem>>, %arg2: memref<1x4x16x16xf32, #tpu.memory_space<vmem>>, %arg3: memref<1x4x16x16xf32, #tpu.memory_space<vmem>>, %arg4: memref<9x16x16xf32, #tpu.memory_space<vmem>>, %arg5: memref<4x24x16xf32, #tpu.memory_space<vmem>>) attributes {dimension_semantics = [#tpu.dimension_semantics<parallel>], iteration_bounds = array<i64: 2>, scalar_prefetch = 1 : i64, scratch_operands = 2 : i64, tpu.core_type = #tpu.core_type<tc>, window_params = [{transform_indices = @transform_0, window_bounds = array<i64: 1, 4, 16, 16>}, {transform_indices = @transform_1, window_bounds = array<i64: 1, 4, 16, 16>}]} {
    %0 = tpu.iota {dimensions = array<i32: 0>} : vector<16x16xi32>
    %1 = tpu.iota {dimensions = array<i32: 1>} : vector<16x16xi32>
    %c-4_i32 = arith.constant -4 : i32
    %2 = vector.broadcast %c-4_i32 : i32 to vector<16x16xi32>
    %3 = arith.addi %1, %2 : vector<16x16xi32>
    %c0_i32 = arith.constant 0 : i32
    %c15_i32 = arith.constant 15 : i32
    %4 = vector.broadcast %c0_i32 : i32 to vector<16x16xi32>
    %5 = arith.maxsi %4, %3 : vector<16x16xi32>
    %6 = vector.broadcast %c15_i32 : i32 to vector<16x16xi32>
    %7 = arith.minsi %6, %5 : vector<16x16xi32>
    %8 = arith.cmpi eq, %0, %7 : vector<16x16xi32>
    %9 = arith.extui %8 : vector<16x16xi1> to vector<16x16xi32>
    %10 = arith.sitofp %9 : vector<16x16xi32> to vector<16x16xf32>
    %c0 = arith.constant 0 : index
    %c0_0 = arith.constant 0 : index
    %c0_1 = arith.constant 0 : index
    %11 = vector.load %arg4[%c0, %c0_0, %c0_1] : memref<9x16x16xf32, #tpu.memory_space<vmem>>, vector<1x16x16xf32>
    %12 = vector.shape_cast %11 : vector<1x16x16xf32> to vector<16x16xf32>
    %13 = vector.shape_cast %10 : vector<16x16xf32> to vector<1x16x16xf32>
    tpu.vector_store %arg4[%c0, %c0_0, %c0_1], %13 {strides = array<i32>} : memref<9x16x16xf32, #tpu.memory_space<vmem>>, vector<1x16x16xf32>,
    %c-3_i32 = arith.constant -3 : i32
    %14 = vector.broadcast %c-3_i32 : i32 to vector<16x16xi32>
    %15 = arith.addi %1, %14 : vector<16x16xi32>
    %c0_i32_2 = arith.constant 0 : i32
    %c15_i32_3 = arith.constant 15 : i32
    %16 = vector.broadcast %c0_i32_2 : i32 to vector<16x16xi32>
    %17 = arith.maxsi %16, %15 : vector<16x16xi32>
    %18 = vector.broadcast %c15_i32_3 : i32 to vector<16x16xi32>
    %19 = arith.minsi %18, %17 : vector<16x16xi32>
    %20 = arith.cmpi eq, %0, %19 : vector<16x16xi32>
    %21 = arith.extui %20 : vector<16x16xi1> to vector<16x16xi32>
    %22 = arith.sitofp %21 : vector<16x16xi32> to vector<16x16xf32>
    %c1 = arith.constant 1 : index
    %c0_4 = arith.constant 0 : index
    %c0_5 = arith.constant 0 : index
    %23 = vector.load %arg4[%c1, %c0_4, %c0_5] : memref<9x16x16xf32, #tpu.memory_space<vmem>>, vector<1x16x16xf32>
    %24 = vector.shape_cast %23 : vector<1x16x16xf32> to vector<16x16xf32>
    %25 = vector.shape_cast %22 : vector<16x16xf32> to vector<1x16x16xf32>
    tpu.vector_store %arg4[%c1, %c0_4, %c0_5], %25 {strides = array<i32>} : memref<9x16x16xf32, #tpu.memory_space<vmem>>, vector<1x16x16xf32>,
    %c-2_i32 = arith.constant -2 : i32
    %26 = vector.broadcast %c-2_i32 : i32 to vector<16x16xi32>
    %27 = arith.addi %1, %26 : vector<16x16xi32>
    %c0_i32_6 = arith.constant 0 : i32
    %c15_i32_7 = arith.constant 15 : i32
    %28 = vector.broadcast %c0_i32_6 : i32 to vector<16x16xi32>
    %29 = arith.maxsi %28, %27 : vector<16x16xi32>
    %30 = vector.broadcast %c15_i32_7 : i32 to vector<16x16xi32>
    %31 = arith.minsi %30, %29 : vector<16x16xi32>
    %32 = arith.cmpi eq, %0, %31 : vector<16x16xi32>
    %33 = arith.extui %32 : vector<16x16xi1> to vector<16x16xi32>
    %34 = arith.sitofp %33 : vector<16x16xi32> to vector<16x16xf32>
    %c2 = arith.constant 2 : index
    %c0_8 = arith.constant 0 : index
    %c0_9 = arith.constant 0 : index
    %35 = vector.load %arg4[%c2, %c0_8, %c0_9] : memref<9x16x16xf32, #tpu.memory_space<vmem>>, vector<1x16x16xf32>
    %36 = vector.shape_cast %35 : vector<1x16x16xf32> to vector<16x16xf32>
    %37 = vector.shape_cast %34 : vector<16x16xf32> to vector<1x16x16xf32>
    tpu.vector_store %arg4[%c2, %c0_8, %c0_9], %37 {strides = array<i32>} : memref<9x16x16xf32, #tpu.memory_space<vmem>>, vector<1x16x16xf32>,
    %c-1_i32 = arith.constant -1 : i32
    %38 = vector.broadcast %c-1_i32 : i32 to vector<16x16xi32>
    %39 = arith.addi %1, %38 : vector<16x16xi32>
    %c0_i32_10 = arith.constant 0 : i32
    %c15_i32_11 = arith.constant 15 : i32
    %40 = vector.broadcast %c0_i32_10 : i32 to vector<16x16xi32>
    %41 = arith.maxsi %40, %39 : vector<16x16xi32>
    %42 = vector.broadcast %c15_i32_11 : i32 to vector<16x16xi32>
    %43 = arith.minsi %42, %41 : vector<16x16xi32>
    %44 = arith.cmpi eq, %0, %43 : vector<16x16xi32>
    %45 = arith.extui %44 : vector<16x16xi1> to vector<16x16xi32>
    %46 = arith.sitofp %45 : vector<16x16xi32> to vector<16x16xf32>
    %c3 = arith.constant 3 : index
    %c0_12 = arith.constant 0 : index
    %c0_13 = arith.constant 0 : index
    %47 = vector.load %arg4[%c3, %c0_12, %c0_13] : memref<9x16x16xf32, #tpu.memory_space<vmem>>, vector<1x16x16xf32>
    %48 = vector.shape_cast %47 : vector<1x16x16xf32> to vector<16x16xf32>
    %49 = vector.shape_cast %46 : vector<16x16xf32> to vector<1x16x16xf32>
    tpu.vector_store %arg4[%c3, %c0_12, %c0_13], %49 {strides = array<i32>} : memref<9x16x16xf32, #tpu.memory_space<vmem>>, vector<1x16x16xf32>,
    %c0_i32_14 = arith.constant 0 : i32
    %50 = vector.broadcast %c0_i32_14 : i32 to vector<16x16xi32>
    %51 = arith.addi %1, %50 : vector<16x16xi32>
    %c0_i32_15 = arith.constant 0 : i32
    %c15_i32_16 = arith.constant 15 : i32
    %52 = vector.broadcast %c0_i32_15 : i32 to vector<16x16xi32>
    %53 = arith.maxsi %52, %51 : vector<16x16xi32>
    %54 = vector.broadcast %c15_i32_16 : i32 to vector<16x16xi32>
    %55 = arith.minsi %54, %53 : vector<16x16xi32>
    %56 = arith.cmpi eq, %0, %55 : vector<16x16xi32>
    %57 = arith.extui %56 : vector<16x16xi1> to vector<16x16xi32>
    %58 = arith.sitofp %57 : vector<16x16xi32> to vector<16x16xf32>
    %c4 = arith.constant 4 : index
    %c0_17 = arith.constant 0 : index
    %c0_18 = arith.constant 0 : index
    %59 = vector.load %arg4[%c4, %c0_17, %c0_18] : memref<9x16x16xf32, #tpu.memory_space<vmem>>, vector<1x16x16xf32>
    %60 = vector.shape_cast %59 : vector<1x16x16xf32> to vector<16x16xf32>
    %61 = vector.shape_cast %58 : vector<16x16xf32> to vector<1x16x16xf32>
    tpu.vector_store %arg4[%c4, %c0_17, %c0_18], %61 {strides = array<i32>} : memref<9x16x16xf32, #tpu.memory_space<vmem>>, vector<1x16x16xf32>,
    %c1_i32 = arith.constant 1 : i32
    %62 = vector.broadcast %c1_i32 : i32 to vector<16x16xi32>
    %63 = arith.addi %1, %62 : vector<16x16xi32>
    %c0_i32_19 = arith.constant 0 : i32
    %c15_i32_20 = arith.constant 15 : i32
    %64 = vector.broadcast %c0_i32_19 : i32 to vector<16x16xi32>
    %65 = arith.maxsi %64, %63 : vector<16x16xi32>
    %66 = vector.broadcast %c15_i32_20 : i32 to vector<16x16xi32>
    %67 = arith.minsi %66, %65 : vector<16x16xi32>
    %68 = arith.cmpi eq, %0, %67 : vector<16x16xi32>
    %69 = arith.extui %68 : vector<16x16xi1> to vector<16x16xi32>
    %70 = arith.sitofp %69 : vector<16x16xi32> to vector<16x16xf32>
    %c5 = arith.constant 5 : index
    %c0_21 = arith.constant 0 : index
    %c0_22 = arith.constant 0 : index
    %71 = vector.load %arg4[%c5, %c0_21, %c0_22] : memref<9x16x16xf32, #tpu.memory_space<vmem>>, vector<1x16x16xf32>
    %72 = vector.shape_cast %71 : vector<1x16x16xf32> to vector<16x16xf32>
    %73 = vector.shape_cast %70 : vector<16x16xf32> to vector<1x16x16xf32>
    tpu.vector_store %arg4[%c5, %c0_21, %c0_22], %73 {strides = array<i32>} : memref<9x16x16xf32, #tpu.memory_space<vmem>>, vector<1x16x16xf32>,
    %c2_i32 = arith.constant 2 : i32
    %74 = vector.broadcast %c2_i32 : i32 to vector<16x16xi32>
    %75 = arith.addi %1, %74 : vector<16x16xi32>
    %c0_i32_23 = arith.constant 0 : i32
    %c15_i32_24 = arith.constant 15 : i32
    %76 = vector.broadcast %c0_i32_23 : i32 to vector<16x16xi32>
    %77 = arith.maxsi %76, %75 : vector<16x16xi32>
    %78 = vector.broadcast %c15_i32_24 : i32 to vector<16x16xi32>
    %79 = arith.minsi %78, %77 : vector<16x16xi32>
    %80 = arith.cmpi eq, %0, %79 : vector<16x16xi32>
    %81 = arith.extui %80 : vector<16x16xi1> to vector<16x16xi32>
    %82 = arith.sitofp %81 : vector<16x16xi32> to vector<16x16xf32>
    %c6 = arith.constant 6 : index
    %c0_25 = arith.constant 0 : index
    %c0_26 = arith.constant 0 : index
    %83 = vector.load %arg4[%c6, %c0_25, %c0_26] : memref<9x16x16xf32, #tpu.memory_space<vmem>>, vector<1x16x16xf32>
    %84 = vector.shape_cast %83 : vector<1x16x16xf32> to vector<16x16xf32>
    %85 = vector.shape_cast %82 : vector<16x16xf32> to vector<1x16x16xf32>
    tpu.vector_store %arg4[%c6, %c0_25, %c0_26], %85 {strides = array<i32>} : memref<9x16x16xf32, #tpu.memory_space<vmem>>, vector<1x16x16xf32>,
    %c3_i32 = arith.constant 3 : i32
    %86 = vector.broadcast %c3_i32 : i32 to vector<16x16xi32>
    %87 = arith.addi %1, %86 : vector<16x16xi32>
    %c0_i32_27 = arith.constant 0 : i32
    %c15_i32_28 = arith.constant 15 : i32
    %88 = vector.broadcast %c0_i32_27 : i32 to vector<16x16xi32>
    %89 = arith.maxsi %88, %87 : vector<16x16xi32>
    %90 = vector.broadcast %c15_i32_28 : i32 to vector<16x16xi32>
    %91 = arith.minsi %90, %89 : vector<16x16xi32>
    %92 = arith.cmpi eq, %0, %91 : vector<16x16xi32>
    %93 = arith.extui %92 : vector<16x16xi1> to vector<16x16xi32>
    %94 = arith.sitofp %93 : vector<16x16xi32> to vector<16x16xf32>
    %c7 = arith.constant 7 : index
    %c0_29 = arith.constant 0 : index
    %c0_30 = arith.constant 0 : index
    %95 = vector.load %arg4[%c7, %c0_29, %c0_30] : memref<9x16x16xf32, #tpu.memory_space<vmem>>, vector<1x16x16xf32>
    %96 = vector.shape_cast %95 : vector<1x16x16xf32> to vector<16x16xf32>
    %97 = vector.shape_cast %94 : vector<16x16xf32> to vector<1x16x16xf32>
    tpu.vector_store %arg4[%c7, %c0_29, %c0_30], %97 {strides = array<i32>} : memref<9x16x16xf32, #tpu.memory_space<vmem>>, vector<1x16x16xf32>,
    %c4_i32 = arith.constant 4 : i32
    %98 = vector.broadcast %c4_i32 : i32 to vector<16x16xi32>
    %99 = arith.addi %1, %98 : vector<16x16xi32>
    %c0_i32_31 = arith.constant 0 : i32
    %c15_i32_32 = arith.constant 15 : i32
    %100 = vector.broadcast %c0_i32_31 : i32 to vector<16x16xi32>
    %101 = arith.maxsi %100, %99 : vector<16x16xi32>
    %102 = vector.broadcast %c15_i32_32 : i32 to vector<16x16xi32>
    %103 = arith.minsi %102, %101 : vector<16x16xi32>
    %104 = arith.cmpi eq, %0, %103 : vector<16x16xi32>
    %105 = arith.extui %104 : vector<16x16xi1> to vector<16x16xi32>
    %106 = arith.sitofp %105 : vector<16x16xi32> to vector<16x16xf32>
    %c8 = arith.constant 8 : index
    %c0_33 = arith.constant 0 : index
    %c0_34 = arith.constant 0 : index
    %107 = vector.load %arg4[%c8, %c0_33, %c0_34] : memref<9x16x16xf32, #tpu.memory_space<vmem>>, vector<1x16x16xf32>
    %108 = vector.shape_cast %107 : vector<1x16x16xf32> to vector<16x16xf32>
    %109 = vector.shape_cast %106 : vector<16x16xf32> to vector<1x16x16xf32>
    tpu.vector_store %arg4[%c8, %c0_33, %c0_34], %109 {strides = array<i32>} : memref<9x16x16xf32, #tpu.memory_space<vmem>>, vector<1x16x16xf32>,
    %c0_i32_35 = arith.constant 0 : i32
    %c1_i32_36 = arith.constant 1 : i32
    %110 = arith.muli %arg0, %c1_i32_36 : i32
    %111 = arith.addi %110, %c0_i32_35 : i32
    %c2_i32_37 = arith.constant 2 : i32
    %112 = arith.muli %c2_i32_37, %111 : i32
    %c0_i32_38 = arith.constant 0 : i32
    %113 = arith.addi %112, %c0_i32_38 : i32
    %114 = arith.index_cast %113 : i32 to index
    %115 = memref.load %arg1[%114] : memref<4xi32, #tpu.memory_space<smem>>
    %c2_i32_39 = arith.constant 2 : i32
    %116 = arith.muli %c2_i32_39, %111 : i32
    %c1_i32_40 = arith.constant 1 : i32
    %117 = arith.addi %116, %c1_i32_40 : i32
    %118 = arith.index_cast %117 : i32 to index
    %119 = memref.load %arg1[%118] : memref<4xi32, #tpu.memory_space<smem>>
    %120 = arith.index_cast %c0_i32_35 : i32 to index
    %c0_41 = arith.constant 0 : index
    %c0_42 = arith.constant 0 : index
    %c0_43 = arith.constant 0 : index
    %121 = vector.load %arg2[%120, %c0_41, %c0_42, %c0_43] : memref<1x4x16x16xf32, #tpu.memory_space<vmem>>, vector<1x4x16x16xf32>
    %122 = vector.shape_cast %121 : vector<1x4x16x16xf32> to vector<4x16x16xf32>
    %123 = vector.shape_cast %122 : vector<4x16x16xf32> to vector<64x16xf32>
    %124 = arith.index_cast %115 : i32 to index
    %c0_44 = arith.constant 0 : index
    %c0_45 = arith.constant 0 : index
    %125 = vector.load %arg4[%124, %c0_44, %c0_45] : memref<9x16x16xf32, #tpu.memory_space<vmem>>, vector<1x16x16xf32>
    %126 = vector.shape_cast %125 : vector<1x16x16xf32> to vector<16x16xf32>
    %cst = arith.constant dense<0.000000e+00> : vector<64x16xf32>
    %127 = tpu.matmul %123, %126, %cst {dimension_numbers = #tpu.dot_dimension_numbers<[1], [0], [0], [1], [0, 0, 1, 1], [], []>} : vector<64x16xf32>, vector<16x16xf32>, vector<64x16xf32> -> vector<64x16xf32>
    %128 = vector.shape_cast %127 : vector<64x16xf32> to vector<4x16x16xf32>
    %c0_46 = arith.constant 0 : index
    %c4_47 = arith.constant 4 : index
    %c0_48 = arith.constant 0 : index
    %129 = vector.load %arg5[%c0_46, %c4_47, %c0_48] : memref<4x24x16xf32, #tpu.memory_space<vmem>>, vector<4x16x16xf32>
    tpu.vector_store %arg5[%c0_46, %c4_47, %c0_48], %128 {strides = array<i32>} : memref<4x24x16xf32, #tpu.memory_space<vmem>>, vector<4x16x16xf32>,
    %130 = vector.extract_strided_slice %128 {offsets = [0, 0, 0], sizes = [4, 1, 16], strides = [1, 1, 1]} : vector<4x16x16xf32> to vector<4x1x16xf32>
    %131 = vector.shape_cast %130 : vector<4x1x16xf32> to vector<4x1x16xf32>
    %132 = vector.broadcast %131 : vector<4x1x16xf32> to vector<4x4x16xf32>
    %c0_49 = arith.constant 0 : index
    %c0_50 = arith.constant 0 : index
    %c0_51 = arith.constant 0 : index
    %133 = vector.load %arg5[%c0_49, %c0_50, %c0_51] : memref<4x24x16xf32, #tpu.memory_space<vmem>>, vector<4x4x16xf32>
    tpu.vector_store %arg5[%c0_49, %c0_50, %c0_51], %132 {strides = array<i32>} : memref<4x24x16xf32, #tpu.memory_space<vmem>>, vector<4x4x16xf32>,
    %134 = vector.extract_strided_slice %128 {offsets = [0, 15, 0], sizes = [4, 1, 16], strides = [1, 1, 1]} : vector<4x16x16xf32> to vector<4x1x16xf32>
    %135 = vector.shape_cast %134 : vector<4x1x16xf32> to vector<4x1x16xf32>
    %136 = vector.broadcast %135 : vector<4x1x16xf32> to vector<4x4x16xf32>
    %c0_52 = arith.constant 0 : index
    %c20 = arith.constant 20 : index
    %c0_53 = arith.constant 0 : index
    %137 = vector.load %arg5[%c0_52, %c20, %c0_53] : memref<4x24x16xf32, #tpu.memory_space<vmem>>, vector<4x4x16xf32>
    tpu.vector_store %arg5[%c0_52, %c20, %c0_53], %136 {strides = array<i32>} : memref<4x24x16xf32, #tpu.memory_space<vmem>>, vector<4x4x16xf32>,
    %c0_54 = arith.constant 0 : index
    %138 = arith.index_cast %119 : i32 to index
    %c0_55 = arith.constant 0 : index
    %139 = vector.load %arg5[%c0_54, %138, %c0_55] : memref<4x24x16xf32, #tpu.memory_space<vmem>>, vector<1x16x16xf32>
    %140 = vector.shape_cast %139 : vector<1x16x16xf32> to vector<16x16xf32>
    %141 = arith.index_cast %c0_i32_35 : i32 to index
    %c0_56 = arith.constant 0 : index
    %c0_57 = arith.constant 0 : index
    %c0_58 = arith.constant 0 : index
    %142 = vector.load %arg3[%141, %c0_56, %c0_57, %c0_58] : memref<1x4x16x16xf32, #tpu.memory_space<vmem>>, vector<1x1x16x16xf32>
    %143 = vector.shape_cast %142 : vector<1x1x16x16xf32> to vector<16x16xf32>
    %144 = vector.shape_cast %140 : vector<16x16xf32> to vector<1x1x16x16xf32>
    tpu.vector_store %arg3[%141, %c0_56, %c0_57, %c0_58], %144 {strides = array<i32>} : memref<1x4x16x16xf32, #tpu.memory_space<vmem>>, vector<1x1x16x16xf32>,
    %c1_59 = arith.constant 1 : index
    %145 = arith.index_cast %119 : i32 to index
    %c0_60 = arith.constant 0 : index
    %146 = vector.load %arg5[%c1_59, %145, %c0_60] : memref<4x24x16xf32, #tpu.memory_space<vmem>>, vector<1x16x16xf32>
    %147 = vector.shape_cast %146 : vector<1x16x16xf32> to vector<16x16xf32>
    %148 = arith.index_cast %c0_i32_35 : i32 to index
    %c1_61 = arith.constant 1 : index
    %c0_62 = arith.constant 0 : index
    %c0_63 = arith.constant 0 : index
    %149 = vector.load %arg3[%148, %c1_61, %c0_62, %c0_63] : memref<1x4x16x16xf32, #tpu.memory_space<vmem>>, vector<1x1x16x16xf32>
    %150 = vector.shape_cast %149 : vector<1x1x16x16xf32> to vector<16x16xf32>
    %151 = vector.shape_cast %147 : vector<16x16xf32> to vector<1x1x16x16xf32>
    tpu.vector_store %arg3[%148, %c1_61, %c0_62, %c0_63], %151 {strides = array<i32>} : memref<1x4x16x16xf32, #tpu.memory_space<vmem>>, vector<1x1x16x16xf32>,
    %c2_64 = arith.constant 2 : index
    %152 = arith.index_cast %119 : i32 to index
    %c0_65 = arith.constant 0 : index
    %153 = vector.load %arg5[%c2_64, %152, %c0_65] : memref<4x24x16xf32, #tpu.memory_space<vmem>>, vector<1x16x16xf32>
    %154 = vector.shape_cast %153 : vector<1x16x16xf32> to vector<16x16xf32>
    %155 = arith.index_cast %c0_i32_35 : i32 to index
    %c2_66 = arith.constant 2 : index
    %c0_67 = arith.constant 0 : index
    %c0_68 = arith.constant 0 : index
    %156 = vector.load %arg3[%155, %c2_66, %c0_67, %c0_68] : memref<1x4x16x16xf32, #tpu.memory_space<vmem>>, vector<1x1x16x16xf32>
    %157 = vector.shape_cast %156 : vector<1x1x16x16xf32> to vector<16x16xf32>
    %158 = vector.shape_cast %154 : vector<16x16xf32> to vector<1x1x16x16xf32>
    tpu.vector_store %arg3[%155, %c2_66, %c0_67, %c0_68], %158 {strides = array<i32>} : memref<1x4x16x16xf32, #tpu.memory_space<vmem>>, vector<1x1x16x16xf32>,
    %c3_69 = arith.constant 3 : index
    %159 = arith.index_cast %119 : i32 to index
    %c0_70 = arith.constant 0 : index
    %160 = vector.load %arg5[%c3_69, %159, %c0_70] : memref<4x24x16xf32, #tpu.memory_space<vmem>>, vector<1x16x16xf32>
    %161 = vector.shape_cast %160 : vector<1x16x16xf32> to vector<16x16xf32>
    %162 = arith.index_cast %c0_i32_35 : i32 to index
    %c3_71 = arith.constant 3 : index
    %c0_72 = arith.constant 0 : index
    %c0_73 = arith.constant 0 : index
    %163 = vector.load %arg3[%162, %c3_71, %c0_72, %c0_73] : memref<1x4x16x16xf32, #tpu.memory_space<vmem>>, vector<1x1x16x16xf32>
    %164 = vector.shape_cast %163 : vector<1x1x16x16xf32> to vector<16x16xf32>
    %165 = vector.shape_cast %161 : vector<16x16xf32> to vector<1x1x16x16xf32>
    tpu.vector_store %arg3[%162, %c3_71, %c0_72, %c0_73], %165 {strides = array<i32>} : memref<1x4x16x16xf32, #tpu.memory_space<vmem>>, vector<1x1x16x16xf32>,
    %c1_i32_74 = arith.constant 1 : i32
    return
  }
  func.func @transform_0(%arg0: i32, %arg1: memref<4xi32, #tpu.memory_space<smem>>) -> (i32, i32, i32, i32) {
    %c0_i32 = arith.constant 0 : i32
    %c0_i32_0 = arith.constant 0 : i32
    %c0_i32_1 = arith.constant 0 : i32
    %c0_i32_2 = arith.constant 0 : i32
    return %arg0, %c0_i32, %c0_i32_0, %c0_i32_1 : i32, i32, i32, i32
  }
  func.func @transform_1(%arg0: i32, %arg1: memref<4xi32, #tpu.memory_space<smem>>) -> (i32, i32, i32, i32) {
    %c0_i32 = arith.constant 0 : i32
    %c0_i32_0 = arith.constant 0 : i32
    %c0_i32_1 = arith.constant 0 : i32
    %c0_i32_2 = arith.constant 0 : i32
    return %arg0, %c0_i32, %c0_i32_0, %c0_i32_1 : i32, i32, i32, i32
  }
}

</mosaic_0001>

<llo_original>
// kernel: random_shifts_aug.1
$region0: #{random_shifts_aug.1}
  #allocation0 [shape = 'u32[]', space=smem, size = 0x4, offset = 0x4, fixed_abs, tag = 'smem constant byte address 0x4 - core index']
  #allocation1 [shape = 'u32[144,128]{1,0:T(1,128)}', space=vmem, size = 0x12000, scoped, tag = 'internal scratch']
  #allocation2 [shape = 'f32[9,16,16]{2,1,0:T(8,128)}', space=vmem, size = 0x12000, scoped, tag = 'scratch operand']
  #allocation3 [shape = 'f32[4,24,16]{2,1,0:T(8,128)}', space=vmem, size = 0xc000, scoped, tag = 'scratch operand']
  #allocation4 [shape = 's32[1]{0}', space=sflag, size = 0x4, scoped, tag = 'scoped memory for random_shifts_aug.1']
  #allocation5 [shape = 'u8[512]{0}', space=smem, size = 0x200, scoped, tag = 'prefetched SMEM operand 0']
  %s0 = inlined_call_operand.vmem [shape: s32[4], index: 0, kind: input, shape index: {}]
  %s1 = inlined_call_operand.hbm [shape: f32[2,4,16,16], index: 1, kind: input, shape index: {}]
  %s2 = inlined_call_operand.hbm [shape: f32[2,4,16,16], index: 2, kind: output, shape index: {}]
  %s3 = sld [smem:[#allocation0]]
  $region41: #{random_shifts_aug.1} parent=0
    _
  %s5 = ssub.s32 1, %s3
  %s6 = scalar_select 0, %s5, %s3
  %s7 = sshll.u32 %s0, 4
  %s8 = int_to_ptr.vmem [resolvable:$true] %s7
  %10 = dma.vmem_to_smem %s8, 16, [#allocation5], [#allocation4]
  %11 = dma.done [#allocation4], 16
  %12 = sfence
  $region1: #{random_shifts_aug.1} parent=0
    #allocation6 [shape = 'u8[65536]{0}', space=vmem, size = 0x10000, scoped, tag = 'input window, operand 1']
    #allocation7 [shape = 's32[2]{0}', space=sflag, size = 0x8, scoped, tag = 'scoped memory for random_shifts_aug.1']
    #allocation8 [shape = 's32[2]{0}', space=sflag, size = 0x8, scoped, tag = 'scoped memory for random_shifts_aug.1']
    #allocation9 [shape = 'u8[65536]{0}', space=vmem, size = 0x10000, scoped, tag = 'output window, operand 0']
    %13 = vsyncpa [#allocation7], 0
    %s14 = scalar_lea.sflag [#allocation7], 1
    %15 = vsyncpa %s14, 0
    %16 = vsyncpa [#allocation8], 0
    %s17 = scalar_lea.sflag [#allocation8], 1
    %18 = vsyncpa %s17, 0
    loop: start=0, step=1, limit=4
    $region2: #{random_shifts_aug.1} parent=1 // loop_pre_header
      _
    $region3: #{random_shifts_aug.1} parent=1 // loop_header
      %s20 = sphi 0, %s24
      %p21 = scmp.ge.s32.totalorder %s20, 4
      %s30 = sphi 0, %s32
      %s33 = sphi 0, %s30
      %s34 = sphi 0, %s33
      %s50 = sphi 0, %s34
      %s56 = sphi 0, %s58
      %s59 = sphi 0, %s56
      %s60 = sphi 0, %s59
      %s76 = sphi 0, %s60
    $region4: #{random_shifts_aug.1} parent=1 // loop_header_branch
      %23 = sbr.rel (%p21) target = $region8
    $region5: #{random_shifts_aug.1} parent=1 // loop_body
      %s25 = ssub.s32 %s20, 1
      %s26 = ssub.s32 %s20, 2
      %s27 = sadd.s32 %s20, 1
      %s28 = ssub.s32 %s20, %s27
      %p29 = scmp.eq.s32.totalorder %s28, 0
      %s31 = sadd.s32 %s30, 1
      %s32 = scalar_select %p29, %s30, %s31
      %p35 = pneg %p29
      %p36 = scmp.eq.s32.totalorder %s20, 1
      %p37 = por %p35, %p36
      %p38 = scmp.ne.s32.totalorder %s30, %s33
      %p39 = scmp.eq.s32.totalorder %s20, 0
      %p40 = por %p38, %p39
      %p41 = scmp.ne.s32.totalorder %s30, %s33
      %p42 = scmp.eq.s32.totalorder %s25, 1
      %p43 = por %p41, %p42
      %p44 = scmp.ne.s32.totalorder %s33, %s34
      %p45 = scmp.eq.s32.totalorder %s25, 0
      %p46 = por %p44, %p45
      %p47 = scmp.ne.s32.totalorder %s33, %s34
      %p48 = scmp.eq.s32.totalorder %s26, 1
      %p49 = por %p47, %p48
      %p51 = scmp.ne.s32.totalorder %s34, %s50
      %p52 = scmp.eq.s32.totalorder %s26, 0
      %p53 = por %p51, %p52
      %s54 = ssub.s32 %s20, %s27
      %p55 = scmp.eq.s32.totalorder %s54, 0
      %s57 = sadd.s32 %s56, 1
      %s58 = scalar_select %p55, %s56, %s57
      %p61 = pneg %p55
      %p62 = scmp.eq.s32.totalorder %s20, 1
      %p63 = por %p61, %p62
      %p64 = scmp.ne.s32.totalorder %s56, %s59
      %p65 = scmp.eq.s32.totalorder %s20, 0
      %p66 = por %p64, %p65
      %p67 = scmp.ne.s32.totalorder %s56, %s59
      %p68 = scmp.eq.s32.totalorder %s25, 1
      %p69 = por %p67, %p68
      %p70 = scmp.ne.s32.totalorder %s59, %s60
      %p71 = scmp.eq.s32.totalorder %s25, 0
      %p72 = por %p70, %p71
      %p73 = scmp.ne.s32.totalorder %s59, %s60
      %p74 = scmp.eq.s32.totalorder %s26, 1
      %p75 = por %p73, %p74
      %p77 = scmp.ne.s32.totalorder %s60, %s76
      %p78 = scmp.eq.s32.totalorder %s26, 0
      %p79 = por %p77, %p78
      %p80 = scmp.le.s32.totalorder 1, %s20
      %p81 = scmp.lt.s32.totalorder %s20, 3
      %p82 = pnand %p80, %p81
      %p83 = pneg %p82
      // Predicated region
      $region9: #{random_shifts_aug.1} parent=5 // pred_check
        _
      $region10: #{random_shifts_aug.1} parent=5 // pred_check_branch
        %85 = sbr.rel (%p82) target = $region12
      $region11: #{random_shifts_aug.1} parent=5 // pred_region
        %s86 = ssub.s32 %s20, 1
      $region12: #{random_shifts_aug.1} parent=5 // pred_fallthru
        _
      %p87 = scmp.lt.s32.totalorder %s20, 2
      // Predicated region
      $region13: #{random_shifts_aug.1} parent=5 // pred_check
        %p88 = pneg %p87
      $region14: #{random_shifts_aug.1} parent=5 // pred_check_branch
        %90 = sbr.rel (%p88) target = $region16
      $region15: #{random_shifts_aug.1} parent=5 // pred_region
        // Predicated region
        $region17: #{random_shifts_aug.1} parent=15 // pred_check
          %p91 = pneg %p40
        $region18: #{random_shifts_aug.1} parent=15 // pred_check_branch
          %93 = sbr.rel (%p91) target = $region20
        $region19: #{random_shifts_aug.1} parent=15 // pred_region
          %s94 = sand.u32 %s30, 1
          %s95 = scalar_lea.sflag [#allocation7], %s94
          %s96 = sand.u32 %s30, 1
          %s97 = smul.addr %s96, 64
          %s98 = scalar_lea.vmem [#allocation6], %s97
          %s100 = ssub.s32 1024, 1024
          %101 = vsyncadd %s95, %s100
          %s102 = smul.addr %s20, 8
          %s103 = smul.addr %s102, 128
          %s104 = scalar_lea.hbm %s1, %s103
          %s105 = sshll.u32 %s98, 4
          %s106 = int_to_ptr.vmem [resolvable:$true] %s105
          %111 = dma.hbm_to_vmem [thread:$0]  %s104, 1024, %s106, %s95, 128, 128, 8
        $region20: #{random_shifts_aug.1} parent=15 // pred_fallthru
          _
      $region16: #{random_shifts_aug.1} parent=5 // pred_fallthru
        _
      %p112 = scmp.le.s32.totalorder 1, %s20
      %p113 = scmp.lt.s32.totalorder %s20, 3
      %p114 = pnand %p112, %p113
      %p115 = pneg %p114
      // Predicated region
      $region21: #{random_shifts_aug.1} parent=5 // pred_check
        _
      $region22: #{random_shifts_aug.1} parent=5 // pred_check_branch
        %117 = sbr.rel (%p114) target = $region24
      $region23: #{random_shifts_aug.1} parent=5 // pred_region
        %s118 = ssub.s32 %s20, 1
        %s119 = sand.u32 %s33, 1
        %s120 = scalar_lea.sflag [#allocation7], %s119
        %s121 = sand.u32 %s33, 1
        %s122 = smul.addr %s121, 64
        %s123 = scalar_lea.vmem [#allocation6], %s122
        // Predicated region
        $region25: #{random_shifts_aug.1} parent=23 // pred_check
          %p124 = pneg %p46
        $region26: #{random_shifts_aug.1} parent=23 // pred_check_branch
          %126 = sbr.rel (%p124) target = $region28
        $region27: #{random_shifts_aug.1} parent=23 // pred_region
          %127 = dma.done %s120, 1024
        $region28: #{random_shifts_aug.1} parent=23 // pred_fallthru
          _
        %s128 = sand.u32 %s33, 1
        %s129 = scalar_lea.sflag [#allocation7], %s128
        %s130 = sand.u32 %s33, 1
        %s131 = smul.addr %s130, 64
        %s132 = scalar_lea.vmem [#allocation6], %s131
        %p133 = pneg %p46
        %p134 = pneg %p43
        %p135 = pneg %p72
        %p136 = pneg %p69
        %s137 = sand.u32 %s59, 1
        %s138 = scalar_lea.sflag [#allocation8], %s137
        %s139 = sand.u32 %s59, 1
        %s140 = smul.addr %s139, 64
        %s141 = scalar_lea.vmem [#allocation9], %s140
        %v142 = vlaneseq
        %v143 = vshrl.u32 %v142, 7
        %v144 = vadd.s32 %v143, 8
        %v145 = vlaneseq
        %v146 = vand.u32 %v145, 127
        %v147 = vadd.s32 %v146, 4294967292
        %vm148 = vcmp.gt.s32.totalorder %v147, 0
        %v149 = vsel %vm148, %v147, 0
        %vm150 = vcmp.lt.s32.totalorder %v149, 15
        %v151 = vsel %vm150, %v149, 15
        %vm152 = vcmp.eq.s32.totalorder %v143, %v151
        %vm153 = vcmp.eq.s32.totalorder %v144, %v151
        %v154 = vsel %vm152, 1, 0
        %v155 = vsel %vm153, 1, 0
        %v156 = vcvt.s32.f32 %v154
        %v157 = vcvt.s32.f32 %v155
        %vm158 = vcmask 130048
        %159 = vst.msk [vmem:[#allocation2] sm:$0xff] %vm158, %v156
        %160 = vst.msk [vmem:[#allocation2 + $0x8] sm:$0xff] %vm158, %v157
        %v161 = vadd.s32 %v146, 4294967293
        %vm162 = vcmp.gt.s32.totalorder %v161, 0
        %v163 = vsel %vm162, %v161, 0
        %vm164 = vcmp.lt.s32.totalorder %v163, 15
        %v165 = vsel %vm164, %v163, 15
        %vm166 = vcmp.eq.s32.totalorder %v143, %v165
        %vm167 = vcmp.eq.s32.totalorder %v144, %v165
        %v168 = vsel %vm166, 1, 0
        %v169 = vsel %vm167, 1, 0
        %v170 = vcvt.s32.f32 %v168
        %v171 = vcvt.s32.f32 %v169
        %s172 = scalar_lea.vmem [#allocation2], 16
        %173 = vst.msk [vmem:[%s172] sm:$0xff] %vm158, %v170
        %174 = vst.msk [vmem:[%s172 + $0x8] sm:$0xff] %vm158, %v171
        %v175 = vadd.s32 %v146, 4294967294
        %vm176 = vcmp.gt.s32.totalorder %v175, 0
        %v177 = vsel %vm176, %v175, 0
        %vm178 = vcmp.lt.s32.totalorder %v177, 15
        %v179 = vsel %vm178, %v177, 15
        %vm180 = vcmp.eq.s32.totalorder %v143, %v179
        %vm181 = vcmp.eq.s32.totalorder %v144, %v179
        %v182 = vsel %vm180, 1, 0
        %v183 = vsel %vm181, 1, 0
        %v184 = vcvt.s32.f32 %v182
        %v185 = vcvt.s32.f32 %v183
        %s186 = scalar_lea.vmem [#allocation2], 32
        %187 = vst.msk [vmem:[%s186] sm:$0xff] %vm158, %v184
        %188 = vst.msk [vmem:[%s186 + $0x8] sm:$0xff] %vm158, %v185
        %v189 = vadd.s32 %v146, 4294967295
        %vm190 = vcmp.gt.s32.totalorder %v189, 0
        %v191 = vsel %vm190, %v189, 0
        %vm192 = vcmp.lt.s32.totalorder %v191, 15
        %v193 = vsel %vm192, %v191, 15
        %vm194 = vcmp.eq.s32.totalorder %v143, %v193
        %vm195 = vcmp.eq.s32.totalorder %v144, %v193
        %v196 = vsel %vm194, 1, 0
        %v197 = vsel %vm195, 1, 0
        %v198 = vcvt.s32.f32 %v196
        %v199 = vcvt.s32.f32 %v197
        %s200 = scalar_lea.vmem [#allocation2], 48
        %201 = vst.msk [vmem:[%s200] sm:$0xff] %vm158, %v198
        %202 = vst.msk [vmem:[%s200 + $0x8] sm:$0xff] %vm158, %v199
        %vm203 = vcmp.gt.s32.totalorder %v146, 0
        %v204 = vsel %vm203, %v146, 0
        %vm205 = vcmp.lt.s32.totalorder %v204, 15
        %v206 = vsel %vm205, %v204, 15
        %vm207 = vcmp.eq.s32.totalorder %v143, %v206
        %vm208 = vcmp.eq.s32.totalorder %v144, %v206
        %v209 = vsel %vm207, 1, 0
        %v210 = vsel %vm208, 1, 0
        %v211 = vcvt.s32.f32 %v209
        %v212 = vcvt.s32.f32 %v210
        %s213 = scalar_lea.vmem [#allocation2], 64
        %214 = vst.msk [vmem:[%s213] sm:$0xff] %vm158, %v211
        %215 = vst.msk [vmem:[%s213 + $0x8] sm:$0xff] %vm158, %v212
        %v216 = vadd.s32 %v146, 1
        %vm217 = vcmp.gt.s32.totalorder %v216, 0
        %v218 = vsel %vm217, %v216, 0
        %vm219 = vcmp.lt.s32.totalorder %v218, 15
        %v220 = vsel %vm219, %v218, 15
        %vm221 = vcmp.eq.s32.totalorder %v143, %v220
        %vm222 = vcmp.eq.s32.totalorder %v144, %v220
        %v223 = vsel %vm221, 1, 0
        %v224 = vsel %vm222, 1, 0
        %v225 = vcvt.s32.f32 %v223
        %v226 = vcvt.s32.f32 %v224
        %s227 = scalar_lea.vmem [#allocation2], 80
        %228 = vst.msk [vmem:[%s227] sm:$0xff] %vm158, %v225
        %229 = vst.msk [vmem:[%s227 + $0x8] sm:$0xff] %vm158, %v226
        %v230 = vadd.s32 %v146, 2
        %vm231 = vcmp.gt.s32.totalorder %v230, 0
        %v232 = vsel %vm231, %v230, 0
        %vm233 = vcmp.lt.s32.totalorder %v232, 15
        %v234 = vsel %vm233, %v232, 15
        %vm235 = vcmp.eq.s32.totalorder %v143, %v234
        %vm236 = vcmp.eq.s32.totalorder %v144, %v234
        %v237 = vsel %vm235, 1, 0
        %v238 = vsel %vm236, 1, 0
        %v239 = vcvt.s32.f32 %v237
        %v240 = vcvt.s32.f32 %v238
        %s241 = scalar_lea.vmem [#allocation2], 96
        %242 = vst.msk [vmem:[%s241] sm:$0xff] %vm158, %v239
        %243 = vst.msk [vmem:[%s241 + $0x8] sm:$0xff] %vm158, %v240
        %v244 = vadd.s32 %v146, 3
        %vm245 = vcmp.gt.s32.totalorder %v244, 0
        %v246 = vsel %vm245, %v244, 0
        %vm247 = vcmp.lt.s32.totalorder %v246, 15
        %v248 = vsel %vm247, %v246, 15
        %vm249 = vcmp.eq.s32.totalorder %v143, %v248
        %vm250 = vcmp.eq.s32.totalorder %v144, %v248
        %v251 = vsel %vm249, 1, 0
        %v252 = vsel %vm250, 1, 0
        %v253 = vcvt.s32.f32 %v251
        %v254 = vcvt.s32.f32 %v252
        %s255 = scalar_lea.vmem [#allocation2], 112
        %256 = vst.msk [vmem:[%s255] sm:$0xff] %vm158, %v253
        %257 = vst.msk [vmem:[%s255 + $0x8] sm:$0xff] %vm158, %v254
        %v258 = vadd.s32 %v146, 4
        %vm259 = vcmp.gt.s32.totalorder %v258, 0
        %v260 = vsel %vm259, %v258, 0
        %vm261 = vcmp.lt.s32.totalorder %v260, 15
        %v262 = vsel %vm261, %v260, 15
        %vm263 = vcmp.eq.s32.totalorder %v143, %v262
        %vm264 = vcmp.eq.s32.totalorder %v144, %v262
        %v265 = vsel %vm263, 1, 0
        %v266 = vsel %vm264, 1, 0
        %v267 = vcvt.s32.f32 %v265
        %v268 = vcvt.s32.f32 %v266
        %s269 = scalar_lea.vmem [#allocation2], 128
        %270 = vst.msk [vmem:[%s269] sm:$0xff] %vm158, %v267
        %271 = vst.msk [vmem:[%s269 + $0x8] sm:$0xff] %vm158, %v268
        %s272 = smul.u32 %s25, 2
        %s273 = sld [smem:[#allocation5 + %s272]]
        %s274 = sadd.s32 %s272, 1
        %s275 = sld [smem:[#allocation5 + %s274]]
        %v276 = vld [vmem:[%s123] sm:$0xff]
        %v277 = vld [vmem:[%s123 + $0x8] sm:$0xff]
        %v278 = vld [vmem:[%s123 + $0x10] sm:$0xff]
        %v279 = vld [vmem:[%s123 + $0x18] sm:$0xff]
        %v280 = vld [vmem:[%s123 + $0x20] sm:$0xff]
        %v281 = vld [vmem:[%s123 + $0x28] sm:$0xff]
        %v282 = vld [vmem:[%s123 + $0x30] sm:$0xff]
        %v283 = vld [vmem:[%s123 + $0x38] sm:$0xff]
        %s284 = smul.u32 %s273, 16
        %s285 = scalar_lea.vmem [#allocation2], %s284
        %v286 = vld [vmem:[%s285] sm:$0xff]
        %v287 = vld [vmem:[%s285 + $0x8] sm:$0xff]
        %v289 = vsel %vm158, %v276, 0
        %v292 = vsel %vm158, %v277, 0
        %v295 = vsel %vm158, %v278, 0
        %v298 = vsel %vm158, %v279, 0
        %v301 = vsel %vm158, %v280, 0
        %v304 = vsel %vm158, %v281, 0
        %v307 = vsel %vm158, %v282, 0
        %v310 = vsel %vm158, %v283, 0
        %312 = vmatprep.subr.mxu0 0.0
        %313 = vmatpush1.msra.mxu0 0.0
        %314 = vmatprep.subr.mxu0 0.0
        %315 = vmatpush1.msra.mxu0 0.0
        %316 = vmatprep.subr.mxu0 0.0
        %317 = vmatpush1.msra.mxu0 0.0
        %318 = vmatprep.subr.mxu0 0.0
        %319 = vmatpush1.msra.mxu0 0.0
        %320 = vmatprep.subr.mxu0 0.0
        %321 = vmatpush1.msra.mxu0 0.0
        %322 = vmatprep.subr.mxu0 0.0
        %323 = vmatpush1.msra.mxu0 0.0
        %324 = vmatprep.subr.mxu0 0.0
        %325 = vmatpush1.msra.mxu0 0.0
        %326 = vmatprep.subr.mxu0 0.0
        %327 = vmatpush1.msra.mxu0 0.0
        %328 = vmatprep.subr.mxu0 0.0
        %329 = vmatpush1.msra.mxu0 0.0
        %330 = vmatprep.subr.mxu0 0.0
        %331 = vmatpush1.msra.mxu0 0.0
        %332 = vmatprep.subr.mxu0 0.0
        %333 = vmatpush1.msra.mxu0 0.0
        %334 = vmatprep.subr.mxu0 0.0
        %335 = vmatpush1.msra.mxu0 0.0
        %336 = vmatprep.subr.mxu0 0.0
        %337 = vmatpush1.msra.mxu0 0.0
        %338 = vmatprep.subr.mxu0 0.0
        %339 = vmatpush1.msra.mxu0 0.0
        %340 = vmatprep.subr.mxu0 0.0
        %341 = vmatpush1.msra.mxu0 %v287
        %342 = vmatprep.subr.mxu0 0.0
        %343 = vmatpush1.msra.mxu0 %v286
        %344 = vmatprep.subr.mxu0 0.0
        %345 = vmatpush2.msra.mxu0 0.0
        %346 = vmatprep.subr.mxu0 0.0
        %347 = vmatpush2.msra.mxu0 0.0
        %348 = vmatprep.subr.mxu0 0.0
        %349 = vmatpush2.msra.mxu0 0.0
        %350 = vmatprep.subr.mxu0 0.0
        %351 = vmatpush2.msra.mxu0 0.0
        %352 = vmatprep.subr.mxu0 0.0
        %353 = vmatpush2.msra.mxu0 0.0
        %354 = vmatprep.subr.mxu0 0.0
        %355 = vmatpush2.msra.mxu0 0.0
        %356 = vmatprep.subr.mxu0 0.0
        %357 = vmatpush2.msra.mxu0 0.0
        %358 = vmatprep.subr.mxu0 0.0
        %359 = vmatpush2.msra.mxu0 0.0
        %360 = vmatprep.subr.mxu0 0.0
        %361 = vmatpush2.msra.mxu0 0.0
        %362 = vmatprep.subr.mxu0 0.0
        %363 = vmatpush2.msra.mxu0 0.0
        %364 = vmatprep.subr.mxu0 0.0
        %365 = vmatpush2.msra.mxu0 0.0
        %366 = vmatprep.subr.mxu0 0.0
        %367 = vmatpush2.msra.mxu0 0.0
        %368 = vmatprep.subr.mxu0 0.0
        %369 = vmatpush2.msra.mxu0 0.0
        %370 = vmatprep.subr.mxu0 0.0
        %371 = vmatpush2.msra.mxu0 0.0
        %372 = vmatprep.subr.mxu0 0.0
        %373 = vmatpush2.msra.mxu0 0.0
        %374 = vmatprep.subr.mxu0 0.0
        %375 = vmatpush2.msra.mxu0 0.0
        %376 = vmatprep.mubr.f32.mxu0 0.0
        %377 = vmatmul.mubr.f32.gmra.mxu0 %v289
        %v378 = vpop.f32.mrf.mxu0
        %v379 = vadd.f32 0.0, %v378
        %v380 = vpop.f32.mrf.mxu0
        %381 = vmatprep.mubr.f32.mxu0 0.0
        %382 = vmatmul.mubr.f32.gmra.mxu0 %v292
        %v383 = vpop.f32.mrf.mxu0
        %v384 = vadd.f32 0.0, %v383
        %v385 = vpop.f32.mrf.mxu0
        %386 = vmatprep.mubr.f32.mxu0 0.0
        %387 = vmatmul.mubr.f32.gmra.mxu0 %v295
        %v388 = vpop.f32.mrf.mxu0
        %v389 = vadd.f32 0.0, %v388
        %v390 = vpop.f32.mrf.mxu0
        %391 = vmatprep.mubr.f32.mxu0 0.0
        %392 = vmatmul.mubr.f32.gmra.mxu0 %v298
        %v393 = vpop.f32.mrf.mxu0
        %v394 = vadd.f32 0.0, %v393
        %v395 = vpop.f32.mrf.mxu0
        %396 = vmatprep.mubr.f32.mxu0 0.0
        %397 = vmatmul.mubr.f32.gmra.mxu0 %v301
        %v398 = vpop.f32.mrf.mxu0
        %v399 = vadd.f32 0.0, %v398
        %v400 = vpop.f32.mrf.mxu0
        %401 = vmatprep.mubr.f32.mxu0 0.0
        %402 = vmatmul.mubr.f32.gmra.mxu0 %v304
        %v403 = vpop.f32.mrf.mxu0
        %v404 = vadd.f32 0.0, %v403
        %v405 = vpop.f32.mrf.mxu0
        %406 = vmatprep.mubr.f32.mxu0 0.0
        %407 = vmatmul.mubr.f32.gmra.mxu0 %v307
        %v408 = vpop.f32.mrf.mxu0
        %v409 = vadd.f32 0.0, %v408
        %v410 = vpop.f32.mrf.mxu0
        %411 = vmatprep.mubr.f32.mxu0 0.0
        %412 = vmatmul.mubr.f32.gmra.mxu0 %v310
        %v413 = vpop.f32.mrf.mxu0
        %v414 = vadd.f32 0.0, %v413
        %v415 = vpop.f32.mrf.mxu0
        %416 = vdwg.mxu0
        %417 = vst.msk [vmem:[#allocation3 + $0x4] sm:$0xff] %vm158, %v379
        %418 = vst.msk [vmem:[#allocation3 + $0xc] sm:$0xff] %vm158, %v384
        %419 = vst.msk [vmem:[#allocation3 + $0x1c] sm:$0xff] %vm158, %v389
        %420 = vst.msk [vmem:[#allocation3 + $0x24] sm:$0xff] %vm158, %v394
        %421 = vst.msk [vmem:[#allocation3 + $0x34] sm:$0xff] %vm158, %v399
        %422 = vst.msk [vmem:[#allocation3 + $0x3c] sm:$0xff] %vm158, %v404
        %423 = vst.msk [vmem:[#allocation3 + $0x4c] sm:$0xff] %vm158, %v409
        %424 = vst.msk [vmem:[#allocation3 + $0x54] sm:$0xff] %vm158, %v414
        %v425 = vlaneseq
        %v426 = vshrl.u32 %v425, 7
        %v427 = vsub.s32 0, %v426
        %v428 = vrot.slane %v379, %v427
        %v429 = vlaneseq
        %v430 = vshrl.u32 %v429, 7
        %v431 = vsub.s32 0, %v430
        %v432 = vrot.slane %v389, %v431
        %v433 = vlaneseq
        %v434 = vshrl.u32 %v433, 7
        %v435 = vsub.s32 0, %v434
        %v436 = vrot.slane %v399, %v435
        %v437 = vlaneseq
        %v438 = vshrl.u32 %v437, 7
        %v439 = vsub.s32 0, %v438
        %v440 = vrot.slane %v409, %v439
        %vm441 = vcmask 125952
        %442 = vst.msk [vmem:[#allocation3] sm:$0xf] %vm441, %v428
        %443 = vst.msk [vmem:[#allocation3 + $0x18] sm:$0xf] %vm441, %v432
        %444 = vst.msk [vmem:[#allocation3 + $0x30] sm:$0xf] %vm441, %v436
        %445 = vst.msk [vmem:[#allocation3 + $0x48] sm:$0xf] %vm441, %v440
        %v446 = vlaneseq
        %v447 = vshrl.u32 %v446, 7
        %v448 = vsub.s32 7, %v447
        %v449 = vrot.slane %v384, %v448
        %v450 = vlaneseq
        %v451 = vshrl.u32 %v450, 7
        %v452 = vsub.s32 7, %v451
        %v453 = vrot.slane %v394, %v452
        %v454 = vlaneseq
        %v455 = vshrl.u32 %v454, 7
        %v456 = vsub.s32 7, %v455
        %v457 = vrot.slane %v404, %v456
        %v458 = vlaneseq
        %v459 = vshrl.u32 %v458, 7
        %v460 = vsub.s32 7, %v459
        %v461 = vrot.slane %v414, %v460
        %462 = vst.msk [vmem:[#allocation3 + $0x14] sm:$0xf] %vm441, %v449
        %463 = vst.msk [vmem:[#allocation3 + $0x2c] sm:$0xf] %vm441, %v453
        %464 = vst.msk [vmem:[#allocation3 + $0x44] sm:$0xf] %vm441, %v457
        %465 = vst.msk [vmem:[#allocation3 + $0x5c] sm:$0xf] %vm441, %v461
        %s466 = scalar_lea.vmem [#allocation3], %s275
        %v467 = vld [vmem:[%s466] sm:$0xff]
        %v468 = vld [vmem:[%s466 + $0x8] sm:$0xff]
        %469 = vst.msk [vmem:[%s141] sm:$0xff] %vm158, %v467
        %470 = vst.msk [vmem:[%s141 + $0x8] sm:$0xff] %vm158, %v468
        %s471 = sadd.s32 %s275, 24
        %s472 = scalar_lea.vmem [#allocation3], %s471
        %v473 = vld [vmem:[%s472] sm:$0xff]
        %v474 = vld [vmem:[%s472 + $0x8] sm:$0xff]
        %s475 = scalar_lea.vmem %s141, 16 [#allocation9]
        %476 = vst.msk [vmem:[%s475] sm:$0xff] %vm158, %v473
        %477 = vst.msk [vmem:[%s475 + $0x8] sm:$0xff] %vm158, %v474
        %s478 = sadd.s32 %s275, 48
        %s479 = scalar_lea.vmem [#allocation3], %s478
        %v480 = vld [vmem:[%s479] sm:$0xff]
        %v481 = vld [vmem:[%s479 + $0x8] sm:$0xff]
        %s482 = scalar_lea.vmem %s141, 32 [#allocation9]
        %483 = vst.msk [vmem:[%s482] sm:$0xff] %vm158, %v480
        %484 = vst.msk [vmem:[%s482 + $0x8] sm:$0xff] %vm158, %v481
        %s485 = sadd.s32 %s275, 72
        %s486 = scalar_lea.vmem [#allocation3], %s485
        %v487 = vld [vmem:[%s486] sm:$0xff]
        %v488 = vld [vmem:[%s486 + $0x8] sm:$0xff]
        %s489 = scalar_lea.vmem %s141, 48 [#allocation9]
        %490 = vst.msk [vmem:[%s489] sm:$0xff] %vm158, %v487
        %491 = vst.msk [vmem:[%s489 + $0x8] sm:$0xff] %vm158, %v488
        %s492 = sand.u32 %s59, 1
        %s493 = scalar_lea.sflag [#allocation8], %s492
        %s494 = sand.u32 %s59, 1
        %s495 = smul.addr %s494, 64
        %s496 = scalar_lea.vmem [#allocation9], %s495
        // Predicated region
        $region29: #{random_shifts_aug.1} parent=23 // pred_check
          %p497 = pneg %p69
        $region30: #{random_shifts_aug.1} parent=23 // pred_check_branch
          %499 = sbr.rel (%p497) target = $region32
        $region31: #{random_shifts_aug.1} parent=23 // pred_region
          %s501 = ssub.s32 1024, 1024
          %502 = vsyncadd %s493, %s501
          %s503 = smul.addr %s25, 8
          %s504 = smul.addr %s503, 128
          %s505 = scalar_lea.hbm %s2, %s504
          %s506 = sshll.u32 %s496, 4
          %s507 = int_to_ptr.vmem [resolvable:$true] %s506
          %512 = dma.vmem_to_hbm [thread:$0]  %s507, 1024, %s505, %s493, 128, 128, 8
        $region32: #{random_shifts_aug.1} parent=23 // pred_fallthru
          _
      $region24: #{random_shifts_aug.1} parent=5 // pred_fallthru
        _
      %p513 = scmp.le.s32.totalorder 2, %s20
      // Predicated region
      $region33: #{random_shifts_aug.1} parent=5 // pred_check
        %p514 = pneg %p513
      $region34: #{random_shifts_aug.1} parent=5 // pred_check_branch
        %516 = sbr.rel (%p514) target = $region36
      $region35: #{random_shifts_aug.1} parent=5 // pred_region
        %s517 = ssub.s32 %s20, 2
        // Predicated region
        $region37: #{random_shifts_aug.1} parent=35 // pred_check
          %p518 = pneg %p75
        $region38: #{random_shifts_aug.1} parent=35 // pred_check_branch
          %520 = sbr.rel (%p518) target = $region40
        $region39: #{random_shifts_aug.1} parent=35 // pred_region
          %s521 = sand.u32 %s60, 1
          %s522 = scalar_lea.sflag [#allocation8], %s521
          %s523 = sand.u32 %s60, 1
          %s524 = smul.addr %s523, 64
          %s525 = scalar_lea.vmem [#allocation9], %s524
          %526 = dma.done %s522, 1024
        $region40: #{random_shifts_aug.1} parent=35 // pred_fallthru
          _
      $region36: #{random_shifts_aug.1} parent=5 // pred_fallthru
        _
    $region6: #{random_shifts_aug.1} parent=1 // loop_footer
      %s24 = sadd.s32 1, %s20
    $region7: #{random_shifts_aug.1} parent=1 // loop_footer_branch
      %19 = sbr.rel target = $region3
    $region8: #{random_shifts_aug.1} parent=1 // loop_exit
      _
    %527 = vsyncpa [#allocation7], 1
    %s528 = scalar_lea.sflag [#allocation7], 1
    %529 = vsyncpa %s528, 1
    %530 = vsyncpa [#allocation8], 1
    %s531 = scalar_lea.sflag [#allocation8], 1
    %532 = vsyncpa %s531, 1

</llo_original>
